<compile_context>
chip_gen: v6e
topology: v6e:2x2x1
jax: 0.10.0
libtpu: 0.0.40
codegen_flags: <defaults>
</compile_context>

<pallas_src>
import functools

import jax
import jax.numpy as jnp
from jax import lax
from jax.experimental import pallas as pl
from jax.experimental.pallas import tpu as pltpu


# ----------------------------------------------------------------------------
# Kernel
# ----------------------------------------------------------------------------
def _density_kernel(s_ref, logits_ref, out_ref, *, n_states, chunk):
    """log-density gather for one lane-tile of the batch.

    s_ref      : VMEM (1, TB)    int32  raveled state indices (lane-major)
    logits_ref : VMEM (1, S_pad) f32    full logits table (zero-padded lanes)
    out_ref    : VMEM (1, TB)    f32    logP[s] for this batch tile
    """
    s_pad = logits_ref.shape[1]
    tb = out_ref.shape[1]

    # --- logsumexp over the valid lanes of the table (lane reduce, XLU/EUP) ---
    row = logits_ref[...]                                     # (1, S_pad)
    if s_pad != n_states:
        lane = lax.broadcasted_iota(jnp.int32, (1, s_pad), 1)
        row_m = jnp.where(lane < n_states, row, -jnp.inf)
    else:
        row_m = row
    m = jnp.max(row_m, axis=1, keepdims=True)                 # (1, 1)
    lse = m + jnp.log(jnp.sum(jnp.exp(row_m - m), axis=1, keepdims=True))

    # --- one-hot MXU gather, chunked over the state axis ---
    s_tile = s_ref[...]                                       # (1, TB) int32
    sub_iota = lax.broadcasted_iota(jnp.int32, (chunk, tb), 0)  # hoisted out of loop
    num_chunks = s_pad // chunk

    def body(c, acc):
        base = pl.multiple_of(c * chunk, chunk)
        sub = logits_ref[:, pl.ds(base, chunk)]                # (1, chunk)
        onehot = (sub_iota == (s_tile - base)).astype(sub.dtype)  # (chunk, TB)
        return acc + jnp.dot(sub, onehot, preferred_element_type=jnp.float32)

    gathered = lax.fori_loop(0, num_chunks, body,
                             jnp.zeros((1, tb), jnp.float32))  # (1, TB)

    # Single lane-dense, unmasked store.
    out_ref[...] = (gathered - lse).astype(out_ref.dtype)


# ----------------------------------------------------------------------------
# Wrapper (forward pass)
# ----------------------------------------------------------------------------
def _round_up(x, m):
    return ((x + m - 1) // m) * m


def _pick_lane_tile(padded):
    for t in (512, 256, 128):
        if padded >= t and padded % t == 0:
            return t
    return padded


def tabular_visitation_density_forward(logits, s):
    """Pallas implementation of TabularVisitationDensity.forward.

    logits : (S,) f32 table of state logits
    s      : (B,) int  raveled state indices (transform_state already applied)
    returns: (B, 1) f32 log-probabilities
    """
    logits = jnp.asarray(logits, jnp.float32).reshape(-1)
    s = jnp.asarray(s, jnp.int32).reshape(-1)
    S = logits.shape[0]
    B = s.shape[0]

    # State axis: pad to a multiple of the gather chunk (lane-aligned).
    chunk = min(512, _round_up(S, 128))
    s_pad = _round_up(S, chunk)
    logits_row = jnp.zeros((1, s_pad), jnp.float32).at[0, :S].set(logits)

    # Batch axis: pad to a multiple of 128 lanes, tile the grid over it.
    b_pad = _round_up(B, 128)
    tb = _pick_lane_tile(b_pad)
    s_row = jnp.zeros((1, b_pad), jnp.int32).at[0, :B].set(s)

    kernel = functools.partial(_density_kernel, n_states=S, chunk=chunk)

    out_row = pl.pallas_call(
        kernel,
        out_shape=jax.ShapeDtypeStruct((1, b_pad), jnp.float32),
        grid=(b_pad // tb,),
        in_specs=[
            pl.BlockSpec((1, tb), lambda i: (0, i)),        # batch-tile of indices
            pl.BlockSpec((1, s_pad), lambda i: (0, 0)),     # resident logits table
        ],
        out_specs=pl.BlockSpec((1, tb), lambda i: (0, i)),  # lane-dense output tile
        compiler_params=pltpu.CompilerParams(
            dimension_semantics=("parallel",),
            vmem_limit_bytes=32 * 1024 * 1024,
        ),
    )(s_row, logits_row)

    # Module returns (B, 1); lane-dense kernel output is reshaped here.
    return out_row[0, :B].reshape(B, 1)


# ----------------------------------------------------------------------------
# Pure-JAX reference (mirrors the PyTorch forward)
# ----------------------------------------------------------------------------
def _ref_forward(logits, s):
    logp = logits - jax.scipy.special.logsumexp(logits, axis=0, keepdims=True)
    return logp[s][:, None]


# TODO(synk): distribution()/sample() (torch.distributions.Categorical) are
# host-side sampling utilities, not part of the forward pass; not ported.

if __name__ == "__main__":
    key = jax.random.PRNGKey(0)
    k1, k2, k3, k4 = jax.random.split(key, 4)

    # Case 1: state_dim = (4, 4) -> S = 16 states, batch of 8 raveled indices.
    S1, B1 = 16, 8
    logits1 = jax.random.normal(k1, (S1,), dtype=jnp.float32)
    s1 = jax.random.randint(k2, (B1,), 0, S1, dtype=jnp.int32)
    out1 = tabular_visitation_density_forward(logits1, s1)
    jax.block_until_ready(out1)
    ref1 = _ref_forward(logits1, s1)
    assert out1.shape == (B1, 1)
    assert jnp.allclose(out1, ref1, atol=1e-5, rtol=1e-5)

    # Case 2: exercises lane padding + multi-chunk gather (still small).
    S2, B2 = 600, 200
    logits2 = jax.random.normal(k3, (S2,), dtype=jnp.float32)
    s2 = jax.random.randint(k4, (B2,), 0, S2, dtype=jnp.int32)
    out2 = tabular_visitation_density_forward(logits2, s2)
    jax.block_until_ready(out2)
    ref2 = _ref_forward(logits2, s2)
    assert out2.shape == (B2, 1)
    assert jnp.allclose(out2, ref2, atol=1e-5, rtol=1e-5)

    print("KERNEL_OK")
</pallas_src>

<mosaic_0001>
module attributes {stable_mosaic.version = 11 : i64} {
  func.func @_density_kernel(%arg0: i32, %arg1: memref<1x128xi32, #tpu.memory_space<vmem>>, %arg2: memref<1x128xf32, #tpu.memory_space<vmem>>, %arg3: memref<1x128xf32, #tpu.memory_space<vmem>>) attributes {dimension_semantics = [#tpu.dimension_semantics<parallel>], iteration_bounds = array<i64: 1>, scalar_prefetch = 0 : i64, scratch_operands = 0 : i64, tpu.core_type = #tpu.core_type<tc>, window_params = [{transform_indices = @transform_0, window_bounds = array<i64: 1, 128>}, {pipeline_mode = #tpu.pipeline_mode<synchronous>, transform_indices = @transform_1, window_bounds = array<i64: 1, 128>}, {transform_indices = @transform_2, window_bounds = array<i64: 1, 128>}]} {
    %c0 = arith.constant 0 : index
    %c0_0 = arith.constant 0 : index
    %0 = vector.load %arg2[%c0, %c0_0] : memref<1x128xf32, #tpu.memory_space<vmem>>, vector<1x128xf32>
    %1 = tpu.iota {dimensions = array<i32: 1>} : vector<1x128xi32>
    %c16_i32 = arith.constant 16 : i32
    %2 = vector.broadcast %c16_i32 : i32 to vector<1x128xi32>
    %3 = arith.cmpi slt, %1, %2 : vector<1x128xi32>
    %cst = arith.constant 0xFF800000 : f32
    %4 = vector.broadcast %cst : f32 to vector<1x128xf32>
    %5 = arith.select %3, %0, %4 : vector<1x128xi1>, vector<1x128xf32>
    %cst_1 = arith.constant dense<0xFF800000> : vector<1xf32>
    %6 = vector.multi_reduction <maximumf>, %5, %cst_1 [1] : vector<1x128xf32> to vector<1xf32>
    %7 = vector.shape_cast %6 : vector<1xf32> to vector<1x1xf32>
    %8 = vector.broadcast %7 : vector<1x1xf32> to vector<1x128xf32>
    %9 = arith.subf %5, %8 : vector<1x128xf32>
    %10 = math.exp %9 : vector<1x128xf32>
    %cst_2 = arith.constant dense<0.000000e+00> : vector<1xf32>
    %11 = vector.multi_reduction <add>, %10, %cst_2 [1] : vector<1x128xf32> to vector<1xf32>
    %12 = vector.shape_cast %11 : vector<1xf32> to vector<1x1xf32>
    %13 = math.log %12 : vector<1x1xf32>
    %14 = arith.addf %7, %13 : vector<1x1xf32>
    %c0_3 = arith.constant 0 : index
    %c0_4 = arith.constant 0 : index
    %15 = vector.load %arg1[%c0_3, %c0_4] : memref<1x128xi32, #tpu.memory_space<vmem>>, vector<1x128xi32>
    %16 = tpu.iota {dimensions = array<i32: 0>} : vector<128x128xi32>
    %cst_5 = arith.constant 0.000000e+00 : f32
    %17 = vector.broadcast %cst_5 : f32 to vector<1x128xf32>
    %c0_i32 = arith.constant 0 : i32
    %c128_i32 = arith.constant 128 : i32
    %18 = arith.muli %c0_i32, %c128_i32 : i32
    %19 = tpu.assume_multiple %18, 128 : i32
    %c0_6 = arith.constant 0 : index
    %20 = arith.index_cast %19 : i32 to index
    %21 = vector.load %arg2[%c0_6, %20] : memref<1x128xf32, #tpu.memory_space<vmem>>, vector<1x128xf32>
    %22 = vector.broadcast %19 : i32 to vector<1x128xi32>
    %23 = arith.subi %15, %22 : vector<1x128xi32>
    %24 = vector.broadcast %23 : vector<1x128xi32> to vector<128x128xi32>
    %25 = arith.cmpi eq, %16, %24 : vector<128x128xi32>
    %26 = arith.extui %25 : vector<128x128xi1> to vector<128x128xi32>
    %27 = arith.sitofp %26 : vector<128x128xi32> to vector<128x128xf32>
    %cst_7 = arith.constant dense<0.000000e+00> : vector<1x128xf32>
    %28 = tpu.matmul %21, %27, %cst_7 {dimension_numbers = #tpu.dot_dimension_numbers<[1], [0], [0], [1], [0, 0, 1, 1], [], []>} : vector<1x128xf32>, vector<128x128xf32>, vector<1x128xf32> -> vector<1x128xf32>
    %29 = arith.addf %17, %28 : vector<1x128xf32>
    %c1_i32 = arith.constant 1 : i32
    %30 = vector.broadcast %14 : vector<1x1xf32> to vector<1x128xf32>
    %31 = arith.subf %29, %30 : vector<1x128xf32>
    %c0_8 = arith.constant 0 : index
    %c0_9 = arith.constant 0 : index
    %32 = vector.load %arg3[%c0_8, %c0_9] : memref<1x128xf32, #tpu.memory_space<vmem>>, vector<1x128xf32>
    tpu.vector_store %arg3[%c0_8, %c0_9], %31 {strides = array<i32>} : memref<1x128xf32, #tpu.memory_space<vmem>>, vector<1x128xf32>,
    return
  }
  func.func @transform_0(%arg0: i32) -> (i32, i32) {
    %c0_i32 = arith.constant 0 : i32
    %c0_i32_0 = arith.constant 0 : i32
    return %c0_i32, %arg0 : i32, i32
  }
  func.func @transform_1(%arg0: i32) -> (i32, i32) {
    %c0_i32 = arith.constant 0 : i32
    %c0_i32_0 = arith.constant 0 : i32
    %c0_i32_1 = arith.constant 0 : i32
    return %c0_i32, %c0_i32_0 : i32, i32
  }
  func.func @transform_2(%arg0: i32) -> (i32, i32) {
    %c0_i32 = arith.constant 0 : i32
    %c0_i32_0 = arith.constant 0 : i32
    return %c0_i32, %arg0 : i32, i32
  }
}

</mosaic_0001>

<llo_original>
// kernel: tpu_custom_call.1
$region0: #{tpu_custom_call.1}
  #allocation0 [shape = 'u32[]', space=smem, size = 0x4, offset = 0x4, fixed_abs, tag = 'smem constant byte address 0x4 - core index']
  #allocation1 [shape = 'u32[144,128]{1,0:T(1,128)}', space=vmem, size = 0x12000, scoped, tag = 'internal scratch']
  %s0 = inlined_call_operand.hbm [shape: s32[1,128], index: 0, kind: input, shape index: {}]
  %s1 = inlined_call_operand.vmem [shape: f32[1,128], index: 1, kind: input, shape index: {}]
  %s2 = inlined_call_operand.hbm [shape: f32[1,128], index: 2, kind: output, shape index: {}]
  %s3 = sld [smem:[#allocation0]]
  $region22: #{tpu_custom_call.1} parent=0
    _
  %s5 = ssub.s32 1, %s3
  %s6 = scalar_select 0, %s5, %s3
  $region1: #{tpu_custom_call.1} parent=0
    #allocation2 [shape = 'u8[512]{0}', space=vmem, size = 0x400, scoped, tag = 'input window, operand 0, single buffered']
    #allocation3 [shape = 's32[1]{0}', space=sflag, size = 0x4, scoped, tag = 'scoped memory for tpu_custom_call.1']
    #allocation4 [shape = 's32[1]{0}', space=sflag, size = 0x4, scoped, tag = 'scoped memory for tpu_custom_call.1']
    #allocation5 [shape = 'u8[512]{0}', space=vmem, size = 0x400, scoped, tag = 'output window, operand 0, single buffered']
    %7 = vsyncpa [#allocation3], 0
    %8 = vsyncpa [#allocation4], 0
    // Predicated region
    $region2: #{tpu_custom_call.1} parent=1 // pred_check
      _
    $region3: #{tpu_custom_call.1} parent=1 // pred_check_branch
      %10 = sbr.rel (0) target = $region5
    $region4: #{tpu_custom_call.1} parent=1 // pred_region
      %s12 = ssub.s32 16, 16
      %13 = vsyncadd [#allocation3], %s12
      %s15 = sshll.u32 [#allocation2], 4
      %s16 = int_to_ptr.vmem [resolvable:$true] %s15
      %18 = dma.hbm_to_vmem [thread:$0]  %s0, 16, %s16, [#allocation3]
    $region5: #{tpu_custom_call.1} parent=1 // pred_fallthru
      _
    // Predicated region
    $region6: #{tpu_custom_call.1} parent=1 // pred_check
      _
    $region7: #{tpu_custom_call.1} parent=1 // pred_check_branch
      %20 = sbr.rel (0) target = $region9
    $region8: #{tpu_custom_call.1} parent=1 // pred_region
      _
    $region9: #{tpu_custom_call.1} parent=1 // pred_fallthru
      _
    // Predicated region
    $region10: #{tpu_custom_call.1} parent=1 // pred_check
      _
    $region11: #{tpu_custom_call.1} parent=1 // pred_check_branch
      %22 = sbr.rel (0) target = $region13
    $region12: #{tpu_custom_call.1} parent=1 // pred_region
      %23 = dma.done [#allocation3], 16
    $region13: #{tpu_custom_call.1} parent=1 // pred_fallthru
      _
    %v24 = vld [vmem:[%s1] sm:$0x1]
    %v25 = vlaneseq
    %v26 = vand.u32 %v25, 127
    %vm27 = vcmp.lt.s32.totalorder %v26, 16
    %v28 = vsel %vm27, %v24, -inf
    %vm29 = vcmask 1040384
    %v30 = vsel %vm29, %v28, -inf
    %31 = vmax.xlane.f32.xlu0 %v30
    %v32 = vpop.xlane.xlu0 %31
    %v33 = vsub.f32 %v28, %v32
    %v34 = vmul.f32 %v33, 1.442695
    %v35 = vpow.pop %v34
    %v36 = vsel %vm29, %v35, 0.0
    %37 = vadd.xlane.f32.xlu0 %v36
    %v38 = vpop.xlane.xlu0 %37
    %v39 = vlog2.pop %v38
    %v40 = vmul.f32 %v39, 0.6931472
    %v41 = vadd.f32 %v32, %v40
    %v42 = vld [vmem:[#allocation2] sm:$0x1]
    %v43 = vlaneseq
    %v44 = vshrl.u32 %v43, 7
    %v45 = vadd.s32 %v44, 8
    %v46 = vadd.s32 %v44, 16
    %v47 = vadd.s32 %v44, 24
    %v48 = vadd.s32 %v44, 32
    %v49 = vadd.s32 %v44, 40
    %v50 = vadd.s32 %v44, 48
    %v51 = vadd.s32 %v44, 56
    %v52 = vadd.s32 %v44, 64
    %v53 = vadd.s32 %v44, 72
    %v54 = vadd.s32 %v44, 80
    %v55 = vadd.s32 %v44, 88
    %v56 = vadd.s32 %v44, 96
    %v57 = vadd.s32 %v44, 104
    %v58 = vadd.s32 %v44, 112
    %v59 = vadd.s32 %v44, 120
    %v60 = vld [vmem:[%s1] sm:$0x1]
    %v61 = vstv 0
    %v62 = vsub.s32 %v42, %v61
    %v63 = vlaneseq
    %v64 = vshrl.u32 %v63, 7
    %v65 = vsub.s32 0, %v64
    %v66 = vrot.slane %v62, %v65
    %vm67 = vcmp.eq.s32.totalorder %v44, %v66
    %vm68 = vcmp.eq.s32.totalorder %v45, %v66
    %vm69 = vcmp.eq.s32.totalorder %v46, %v66
    %vm70 = vcmp.eq.s32.totalorder %v47, %v66
    %vm71 = vcmp.eq.s32.totalorder %v48, %v66
    %vm72 = vcmp.eq.s32.totalorder %v49, %v66
    %vm73 = vcmp.eq.s32.totalorder %v50, %v66
    %vm74 = vcmp.eq.s32.totalorder %v51, %v66
    %vm75 = vcmp.eq.s32.totalorder %v52, %v66
    %vm76 = vcmp.eq.s32.totalorder %v53, %v66
    %vm77 = vcmp.eq.s32.totalorder %v54, %v66
    %vm78 = vcmp.eq.s32.totalorder %v55, %v66
    %vm79 = vcmp.eq.s32.totalorder %v56, %v66
    %vm80 = vcmp.eq.s32.totalorder %v57, %v66
    %vm81 = vcmp.eq.s32.totalorder %v58, %v66
    %vm82 = vcmp.eq.s32.totalorder %v59, %v66
    %v83 = vsel %vm67, 1, 0
    %v84 = vsel %vm68, 1, 0
    %v85 = vsel %vm69, 1, 0
    %v86 = vsel %vm70, 1, 0
    %v87 = vsel %vm71, 1, 0
    %v88 = vsel %vm72, 1, 0
    %v89 = vsel %vm73, 1, 0
    %v90 = vsel %vm74, 1, 0
    %v91 = vsel %vm75, 1, 0
    %v92 = vsel %vm76, 1, 0
    %v93 = vsel %vm77, 1, 0
    %v94 = vsel %vm78, 1, 0
    %v95 = vsel %vm79, 1, 0
    %v96 = vsel %vm80, 1, 0
    %v97 = vsel %vm81, 1, 0
    %v98 = vsel %vm82, 1, 0
    %v99 = vcvt.s32.f32 %v83
    %v100 = vcvt.s32.f32 %v84
    %v101 = vcvt.s32.f32 %v85
    %v102 = vcvt.s32.f32 %v86
    %v103 = vcvt.s32.f32 %v87
    %v104 = vcvt.s32.f32 %v88
    %v105 = vcvt.s32.f32 %v89
    %v106 = vcvt.s32.f32 %v90
    %v107 = vcvt.s32.f32 %v91
    %v108 = vcvt.s32.f32 %v92
    %v109 = vcvt.s32.f32 %v93
    %v110 = vcvt.s32.f32 %v94
    %v111 = vcvt.s32.f32 %v95
    %v112 = vcvt.s32.f32 %v96
    %v113 = vcvt.s32.f32 %v97
    %v114 = vcvt.s32.f32 %v98
    %115 = vmatprep.subr.mxu0 0.0
    %116 = vmatpush1.msra.mxu0 %v114
    %117 = vmatprep.subr.mxu0 0.0
    %118 = vmatpush1.msra.mxu0 %v113
    %119 = vmatprep.subr.mxu0 0.0
    %120 = vmatpush1.msra.mxu0 %v112
    %121 = vmatprep.subr.mxu0 0.0
    %122 = vmatpush1.msra.mxu0 %v111
    %123 = vmatprep.subr.mxu0 0.0
    %124 = vmatpush1.msra.mxu0 %v110
    %125 = vmatprep.subr.mxu0 0.0
    %126 = vmatpush1.msra.mxu0 %v109
    %127 = vmatprep.subr.mxu0 0.0
    %128 = vmatpush1.msra.mxu0 %v108
    %129 = vmatprep.subr.mxu0 0.0
    %130 = vmatpush1.msra.mxu0 %v107
    %131 = vmatprep.subr.mxu0 0.0
    %132 = vmatpush1.msra.mxu0 %v106
    %133 = vmatprep.subr.mxu0 0.0
    %134 = vmatpush1.msra.mxu0 %v105
    %135 = vmatprep.subr.mxu0 0.0
    %136 = vmatpush1.msra.mxu0 %v104
    %137 = vmatprep.subr.mxu0 0.0
    %138 = vmatpush1.msra.mxu0 %v103
    %139 = vmatprep.subr.mxu0 0.0
    %140 = vmatpush1.msra.mxu0 %v102
    %141 = vmatprep.subr.mxu0 0.0
    %142 = vmatpush1.msra.mxu0 %v101
    %143 = vmatprep.subr.mxu0 0.0
    %144 = vmatpush1.msra.mxu0 %v100
    %145 = vmatprep.subr.mxu0 0.0
    %146 = vmatpush1.msra.mxu0 %v99
    %147 = vmatprep.subr.mxu0 0.0
    %148 = vmatpush2.msra.mxu0 0.0
    %149 = vmatprep.subr.mxu0 0.0
    %150 = vmatpush2.msra.mxu0 0.0
    %151 = vmatprep.subr.mxu0 0.0
    %152 = vmatpush2.msra.mxu0 0.0
    %153 = vmatprep.subr.mxu0 0.0
    %154 = vmatpush2.msra.mxu0 0.0
    %155 = vmatprep.subr.mxu0 0.0
    %156 = vmatpush2.msra.mxu0 0.0
    %157 = vmatprep.subr.mxu0 0.0
    %158 = vmatpush2.msra.mxu0 0.0
    %159 = vmatprep.subr.mxu0 0.0
    %160 = vmatpush2.msra.mxu0 0.0
    %161 = vmatprep.subr.mxu0 0.0
    %162 = vmatpush2.msra.mxu0 0.0
    %163 = vmatprep.subr.mxu0 0.0
    %164 = vmatpush2.msra.mxu0 0.0
    %165 = vmatprep.subr.mxu0 0.0
    %166 = vmatpush2.msra.mxu0 0.0
    %167 = vmatprep.subr.mxu0 0.0
    %168 = vmatpush2.msra.mxu0 0.0
    %169 = vmatprep.subr.mxu0 0.0
    %170 = vmatpush2.msra.mxu0 0.0
    %171 = vmatprep.subr.mxu0 0.0
    %172 = vmatpush2.msra.mxu0 0.0
    %173 = vmatprep.subr.mxu0 0.0
    %174 = vmatpush2.msra.mxu0 0.0
    %175 = vmatprep.subr.mxu0 0.0
    %176 = vmatpush2.msra.mxu0 0.0
    %177 = vmatprep.subr.mxu0 0.0
    %178 = vmatpush2.msra.mxu0 0.0
    %179 = vmatprep.mubr.f32.mxu0 0.0
    %180 = vmatmul.mubr.f32.gmra.mxu0 %v60
    %v181 = vpop.f32.mrf.mxu0
    %v182 = vadd.f32 0.0, %v181
    %v183 = vpop.f32.mrf.mxu0
    %184 = vdwg.mxu0
    %v185 = vsub.f32 %v182, %v41
    %186 = vst [vmem:[#allocation5] sm:$0x1] %v185
    // Predicated region
    $region14: #{tpu_custom_call.1} parent=1 // pred_check
      _
    $region15: #{tpu_custom_call.1} parent=1 // pred_check_branch
      %188 = sbr.rel (0) target = $region17
    $region16: #{tpu_custom_call.1} parent=1 // pred_region
      %s190 = ssub.s32 16, 16
      %191 = vsyncadd [#allocation4], %s190
      %s193 = sshll.u32 [#allocation5], 4
      %s194 = int_to_ptr.vmem [resolvable:$true] %s193
      %196 = dma.vmem_to_hbm [thread:$0]  %s194, 16, %s2, [#allocation4]
    $region17: #{tpu_custom_call.1} parent=1 // pred_fallthru
      _
    // Predicated region
    $region18: #{tpu_custom_call.1} parent=1 // pred_check
      _
    $region19: #{tpu_custom_call.1} parent=1 // pred_check_branch
      %198 = sbr.rel (0) target = $region21
    $region20: #{tpu_custom_call.1} parent=1 // pred_region
      %199 = dma.done [#allocation4], 16
    $region21: #{tpu_custom_call.1} parent=1 // pred_fallthru
      _
    %200 = vsyncpa [#allocation3], 1
    %201 = vsyncpa [#allocation4], 1

</llo_original>
